<compile_context>
chip_gen: v6e
topology: v6e:2x2x1
jax: 0.10.0
libtpu: 0.0.40
codegen_flags: <defaults>
</compile_context>

<pallas_src>
import jax
import jax.numpy as jnp
from jax.experimental import pallas as pl
from jax.experimental.pallas import tpu as pltpu


def _add_kernel(x_ref, y_ref, o_ref):
    # Pure elementwise VPU add; HBM-bandwidth bound.
    o_ref[...] = x_ref[...] + y_ref[...]


_LANE = 512               # lane-dense last dim (multiple of 128)
_MAX_BLOCK_ROWS = 2048    # (2048, 512) f32 block = 4 MiB per operand
_ROW_ALIGN = 32           # sublane-safe for f32 / bf16 / int8 packing
_MIN_KERNEL_ELEMS = 64 * 1024  # below this, a fused XLA add is strictly faster


def _block_rows_for(rows: int) -> int:
    """Pick the row-block size for the (rows, 512) slab."""
    if rows <= _ROW_ALIGN:
        # Single full-extent block (allowed even when not a multiple of 8).
        return rows
    # Aim for >= 4 grid steps (v7x megacore sharding on mid-sized inputs),
    # capped at ~4 MiB per operand, aligned to the sublane packing multiple.
    quarter = -(-rows // 4)
    quarter = -(-quarter // _ROW_ALIGN) * _ROW_ALIGN
    return max(_ROW_ALIGN, min(_MAX_BLOCK_ROWS, quarter))


def multi_identity(x, y, *, min_kernel_elems=_MIN_KERNEL_ELEMS):
    """Returns (x, x + y); the add runs in a Pallas TPU kernel for large inputs."""
    n = x.size
    if (
        x.shape != y.shape
        or x.dtype != y.dtype
        or n == 0
        or n < min_kernel_elems
        or n % _LANE != 0
    ):
        # Fallback: broadcasting / dtype promotion / tiny or ragged-flat sizes.
        # A fused XLA elementwise add is already at the HBM roofline and avoids
        # both the pallas_call launch cost and any pad/slice copies.
        return x, x + y

    rows = n // _LANE
    x2 = jnp.reshape(x, (rows, _LANE))   # free view of the contiguous array
    y2 = jnp.reshape(y, (rows, _LANE))

    block_rows = _block_rows_for(rows)
    grid = (pl.cdiv(rows, block_rows),)  # ragged last block is masked by Pallas
    blk = pl.BlockSpec((block_rows, _LANE), lambda i: (i, 0))

    s2 = pl.pallas_call(
        _add_kernel,
        out_shape=jax.ShapeDtypeStruct((rows, _LANE), x.dtype),
        grid_spec=pltpu.PrefetchScalarGridSpec(
            num_scalar_prefetch=0,
            grid=grid,
            in_specs=[blk, blk],
            out_specs=blk,
        ),
        compiler_params=pltpu.CompilerParams(
            dimension_semantics=("parallel",),
            # 6 double-buffered 4 MiB slabs = 24 MiB; raise the scoped VMEM
            # limit (v5e default is 16 MiB) while staying under v7x's 64 MiB.
            vmem_limit_bytes=40 * 1024 * 1024,
        ),
    )(x2, y2)

    # Exact-size output: reshape back to the original shape is a free view.
    return x, jnp.reshape(s2, x.shape)


if __name__ == "__main__":
    key = jax.random.PRNGKey(0)
    k1, k2, k3, k4 = jax.random.split(key, 4)

    # Small NCHW demo input (batch=2, channels=4, spatial=16x16):
    # takes the tiny-input fast path by default.
    xs = jax.random.normal(k1, (2, 4, 16, 16), dtype=jnp.float32)
    ys = jax.random.normal(k2, (2, 4, 16, 16), dtype=jnp.float32)
    out_xs, out_ss = multi_identity(xs, ys)

    # Force the Pallas kernel on the same small shape (rows=4 -> single
    # full-extent block) to validate the kernel compiles and runs.
    _, out_ss_k = multi_identity(xs, ys, min_kernel_elems=0)

    # Moderately sized input that exercises the kernel path naturally
    # (4*8*64*64 = 131072 elements, multiple of 512 -> rows=256, grid=4).
    xl = jax.random.normal(k3, (4, 8, 64, 64), dtype=jnp.float32)
    yl = jax.random.normal(k4, (4, 8, 64, 64), dtype=jnp.float32)
    out_xl, out_sl = multi_identity(xl, yl)

    jax.block_until_ready((out_xs, out_ss, out_ss_k, out_xl, out_sl))

    # Reference checks against plain JAX.
    assert jnp.array_equal(out_xs, xs)
    assert jnp.array_equal(out_xl, xl)
    assert jnp.allclose(out_ss, xs + ys, atol=1e-6)
    assert jnp.allclose(out_ss_k, xs + ys, atol=1e-6)
    assert jnp.allclose(out_sl, xl + yl, atol=1e-6)

    print("KERNEL_OK")
</pallas_src>

<mosaic_0001>
module attributes {stable_mosaic.version = 11 : i64} {
  func.func @_add_kernel(%arg0: i32, %arg1: memref<4x512xf32, #tpu.memory_space<vmem>>, %arg2: memref<4x512xf32, #tpu.memory_space<vmem>>, %arg3: memref<4x512xf32, #tpu.memory_space<vmem>>) attributes {dimension_semantics = [#tpu.dimension_semantics<parallel>], iteration_bounds = array<i64: 1>, scalar_prefetch = 0 : i64, scratch_operands = 0 : i64, tpu.core_type = #tpu.core_type<tc>, window_params = [{transform_indices = @transform_0, window_bounds = array<i64: 4, 512>}, {transform_indices = @transform_1, window_bounds = array<i64: 4, 512>}, {transform_indices = @transform_2, window_bounds = array<i64: 4, 512>}]} {
    %c0 = arith.constant 0 : index
    %c0_0 = arith.constant 0 : index
    %0 = vector.load %arg1[%c0, %c0_0] : memref<4x512xf32, #tpu.memory_space<vmem>>, vector<4x512xf32>
    %c0_1 = arith.constant 0 : index
    %c0_2 = arith.constant 0 : index
    %1 = vector.load %arg2[%c0_1, %c0_2] : memref<4x512xf32, #tpu.memory_space<vmem>>, vector<4x512xf32>
    %2 = arith.addf %0, %1 : vector<4x512xf32>
    %c0_3 = arith.constant 0 : index
    %c0_4 = arith.constant 0 : index
    %3 = vector.load %arg3[%c0_3, %c0_4] : memref<4x512xf32, #tpu.memory_space<vmem>>, vector<4x512xf32>
    tpu.vector_store %arg3[%c0_3, %c0_4], %2 {strides = array<i32>} : memref<4x512xf32, #tpu.memory_space<vmem>>, vector<4x512xf32>,
    return
  }
  func.func @transform_0(%arg0: i32) -> (i32, i32) {
    %c0_i32 = arith.constant 0 : i32
    %c0_i32_0 = arith.constant 0 : i32
    return %arg0, %c0_i32 : i32, i32
  }
  func.func @transform_1(%arg0: i32) -> (i32, i32) {
    %c0_i32 = arith.constant 0 : i32
    %c0_i32_0 = arith.constant 0 : i32
    return %arg0, %c0_i32 : i32, i32
  }
  func.func @transform_2(%arg0: i32) -> (i32, i32) {
    %c0_i32 = arith.constant 0 : i32
    %c0_i32_0 = arith.constant 0 : i32
    return %arg0, %c0_i32 : i32, i32
  }
}

</mosaic_0001>

<llo_original>
// kernel: tpu_custom_call.1
$region0: #{tpu_custom_call.1}
  #allocation0 [shape = 'u32[]', space=smem, size = 0x4, offset = 0x4, fixed_abs, tag = 'smem constant byte address 0x4 - core index']
  #allocation1 [shape = 'u32[144,128]{1,0:T(1,128)}', space=vmem, size = 0x12000, scoped, tag = 'internal scratch']
  %s0 = inlined_call_operand.hbm [shape: f32[4,512], index: 0, kind: input, shape index: {}]
  %s1 = inlined_call_operand.hbm [shape: f32[4,512], index: 1, kind: input, shape index: {}]
  %s2 = inlined_call_operand.hbm [shape: f32[4,512], index: 2, kind: output, shape index: {}]
  %s3 = sld [smem:[#allocation0]]
  $region26: #{tpu_custom_call.1} parent=0
    _
  %s5 = ssub.s32 1, %s3
  %s6 = scalar_select 0, %s5, %s3
  $region1: #{tpu_custom_call.1} parent=0
    #allocation2 [shape = 'u8[8192]{0}', space=vmem, size = 0x2000, scoped, tag = 'input window, operand 0, single buffered']
    #allocation3 [shape = 's32[1]{0}', space=sflag, size = 0x4, scoped, tag = 'scoped memory for tpu_custom_call.1']
    #allocation4 [shape = 's32[1]{0}', space=sflag, size = 0x4, scoped, tag = 'scoped memory for tpu_custom_call.1']
    #allocation5 [shape = 'u8[8192]{0}', space=vmem, size = 0x2000, scoped, tag = 'input window, operand 1, single buffered']
    #allocation6 [shape = 's32[1]{0}', space=sflag, size = 0x4, scoped, tag = 'scoped memory for tpu_custom_call.1']
    #allocation7 [shape = 'u8[8192]{0}', space=vmem, size = 0x2000, scoped, tag = 'output window, operand 0, single buffered']
    %7 = vsyncpa [#allocation3], 0
    %8 = vsyncpa [#allocation6], 0
    %9 = vsyncpa [#allocation4], 0
    // Predicated region
    $region2: #{tpu_custom_call.1} parent=1 // pred_check
      _
    $region3: #{tpu_custom_call.1} parent=1 // pred_check_branch
      %11 = sbr.rel (0) target = $region5
    $region4: #{tpu_custom_call.1} parent=1 // pred_region
      %s13 = ssub.s32 256, 256
      %14 = vsyncadd [#allocation3], %s13
      %s16 = sshll.u32 [#allocation2], 4
      %s17 = int_to_ptr.vmem [resolvable:$true] %s16
      %19 = dma.hbm_to_vmem [thread:$0]  %s0, 256, %s17, [#allocation3]
    $region5: #{tpu_custom_call.1} parent=1 // pred_fallthru
      _
    // Predicated region
    $region6: #{tpu_custom_call.1} parent=1 // pred_check
      _
    $region7: #{tpu_custom_call.1} parent=1 // pred_check_branch
      %21 = sbr.rel (0) target = $region9
    $region8: #{tpu_custom_call.1} parent=1 // pred_region
      %s23 = ssub.s32 256, 256
      %24 = vsyncadd [#allocation6], %s23
      %s26 = sshll.u32 [#allocation5], 4
      %s27 = int_to_ptr.vmem [resolvable:$true] %s26
      %29 = dma.hbm_to_vmem [thread:$0]  %s1, 256, %s27, [#allocation6]
    $region9: #{tpu_custom_call.1} parent=1 // pred_fallthru
      _
    // Predicated region
    $region10: #{tpu_custom_call.1} parent=1 // pred_check
      _
    $region11: #{tpu_custom_call.1} parent=1 // pred_check_branch
      %31 = sbr.rel (0) target = $region13
    $region12: #{tpu_custom_call.1} parent=1 // pred_region
      %32 = dma.done [#allocation3], 256
    $region13: #{tpu_custom_call.1} parent=1 // pred_fallthru
      _
    // Predicated region
    $region14: #{tpu_custom_call.1} parent=1 // pred_check
      _
    $region15: #{tpu_custom_call.1} parent=1 // pred_check_branch
      %34 = sbr.rel (0) target = $region17
    $region16: #{tpu_custom_call.1} parent=1 // pred_region
      %35 = dma.done [#allocation6], 256
    $region17: #{tpu_custom_call.1} parent=1 // pred_fallthru
      _
    %v36 = vld [vmem:[#allocation2] sm:$0xff]
    %v37 = vld [vmem:[#allocation2 + $0x8] sm:$0xff]
    %v38 = vld [vmem:[#allocation5] sm:$0xff]
    %v39 = vld [vmem:[#allocation5 + $0x8] sm:$0xff]
    %v40 = vadd.f32 %v36, %v38
    %v41 = vadd.f32 %v37, %v39
    %42 = vst [vmem:[#allocation7] sm:$0xff] %v40
    %43 = vst [vmem:[#allocation7 + $0x8] sm:$0xff] %v41
    // Predicated region
    $region18: #{tpu_custom_call.1} parent=1 // pred_check
      _
    $region19: #{tpu_custom_call.1} parent=1 // pred_check_branch
      %45 = sbr.rel (0) target = $region21
    $region20: #{tpu_custom_call.1} parent=1 // pred_region
      %s47 = ssub.s32 256, 256
      %48 = vsyncadd [#allocation4], %s47
      %s50 = sshll.u32 [#allocation7], 4
      %s51 = int_to_ptr.vmem [resolvable:$true] %s50
      %53 = dma.vmem_to_hbm [thread:$0]  %s51, 256, %s2, [#allocation4]
    $region21: #{tpu_custom_call.1} parent=1 // pred_fallthru
      _
    // Predicated region
    $region22: #{tpu_custom_call.1} parent=1 // pred_check
      _
    $region23: #{tpu_custom_call.1} parent=1 // pred_check_branch
      %55 = sbr.rel (0) target = $region25
    $region24: #{tpu_custom_call.1} parent=1 // pred_region
      %56 = dma.done [#allocation4], 256
    $region25: #{tpu_custom_call.1} parent=1 // pred_fallthru
      _
    %57 = vsyncpa [#allocation3], 1
    %58 = vsyncpa [#allocation6], 1
    %59 = vsyncpa [#allocation4], 1

</llo_original>
